<compile_context>
chip_gen: v7x
topology: tpu7x:2x2x1
jax: 0.10.0
libtpu: 0.0.40
codegen_flags: <defaults>
</compile_context>

<pallas_src>
import jax
import jax.numpy as jnp
from jax.experimental import pallas as pl
from jax.experimental.pallas import tpu as pltpu


def _round_up(x, m):
    return (x + m - 1) // m * m


# --------------------------- Pallas kernel ---------------------------------
def _gru_kernel(x_ref, h_ref, wg_ref, wu_ref, wo_ref, bg_ref, bo_ref,
                h_out_ref, y_ref):
    # x_ref, h_ref : (tb, Cp)     f32   activations (batch tile, feature-padded)
    # wg_ref       : (2Cp, 3Cp)   bf16  [[Wxz Wxr Wt], [Whz Whr 0]]   (in, out)
    # wu_ref       : (Cp, Cp)     bf16
    # wo_ref       : (Cp, Np)     bf16
    # bg_ref       : (1, 3Cp)     f32   [bxz+bhz | bxr+bhr | bt+bu]
    # bo_ref       : (1, Np)      f32
    # h_out_ref    : (tb, Cp) f32,  y_ref : (tb, Np) f32
    Cp = h_ref.shape[-1]
    x = x_ref[...]
    h = h_ref[...]

    def mm(a, w):  # bf16 x bf16 matmul, f32 accumulation on the MXU
        return jnp.dot(a, w, preferred_element_type=jnp.float32)

    def sigmoid(v):
        # exact sigmoid via tanh: transcendental runs on the EUP slot,
        # no f32 divide on the VALU.
        return 0.5 * (jnp.tanh(0.5 * v) + 1.0)

    # One fused gate matmul: (tb, 2Cp) x (2Cp, 3Cp) -> (tb, 3Cp)
    xh = jnp.concatenate([x.astype(jnp.bfloat16), h.astype(jnp.bfloat16)],
                         axis=-1)
    pre = mm(xh, wg_ref[...]) + bg_ref[...]

    z = sigmoid(pre[:, :Cp])
    r = sigmoid(pre[:, Cp:2 * Cp])
    t = pre[:, 2 * Cp:]

    rh = (r * h).astype(jnp.bfloat16)
    h_hat = jnp.tanh(t + mm(rh, wu_ref[...]))

    h_t = h + z * (h_hat - h)
    h_out_ref[...] = h_t
    y_ref[...] = mm(h_t.astype(jnp.bfloat16), wo_ref[...]) + bo_ref[...]


# --------------------------- wrapper ----------------------------------------
def gru_block_forward(x, h, wg, wu, wo, bg, bo, *, block_b=512):
    """x, h: (B, Cp) f32, already feature-padded to Cp (multiple of 128).

    Returns (y, h_t) with shapes (B, Np), (B, Cp) -- feature dims stay padded
    so the recurrent state can be fed back without any pad/slice HBM passes.
    """
    B, Cp = x.shape
    Np = wo.shape[-1]

    Bp8 = _round_up(B, 8)
    tb = min(block_b, Bp8)
    # Ensure >= 2 grid steps for moderately large batches so both of v7x's
    # TensorCores get work under dimension_semantics=("parallel",).
    if Bp8 >= 256:
        tb = min(tb, _round_up(pl.cdiv(Bp8, 2), 8))
    Bp = _round_up(B, tb)

    if Bp != B:  # static check -> pad ops only emitted when actually needed
        x = jnp.pad(x, ((0, Bp - B), (0, 0)))
        h = jnp.pad(h, ((0, Bp - B), (0, 0)))

    h_out, y = pl.pallas_call(
        _gru_kernel,
        out_shape=(jax.ShapeDtypeStruct((Bp, Cp), jnp.float32),
                   jax.ShapeDtypeStruct((Bp, Np), jnp.float32)),
        grid=(Bp // tb,),
        in_specs=[
            pl.BlockSpec((tb, Cp), lambda i: (i, 0)),          # x tile
            pl.BlockSpec((tb, Cp), lambda i: (i, 0)),          # h tile
            pl.BlockSpec((2 * Cp, 3 * Cp), lambda i: (0, 0)),  # fused gate W
            pl.BlockSpec((Cp, Cp), lambda i: (0, 0)),          # Wu
            pl.BlockSpec((Cp, Np), lambda i: (0, 0)),          # Wout
            pl.BlockSpec((1, 3 * Cp), lambda i: (0, 0)),       # fused gate bias
            pl.BlockSpec((1, Np), lambda i: (0, 0)),           # out bias
        ],
        out_specs=(
            pl.BlockSpec((tb, Cp), lambda i: (i, 0)),          # h_t
            pl.BlockSpec((tb, Np), lambda i: (i, 0)),          # y
        ),
        compiler_params=pltpu.CompilerParams(
            dimension_semantics=("parallel",),
            vmem_limit_bytes=32 * 1024 * 1024),
    )(x, h, wg, wu, wo, bg, bo)

    if Bp != B:
        return y[:B], h_out[:B]
    return y, h_out


# --------------------------- module ------------------------------------------
class GRUBlockPallas:
    """Parameters + forward for GRU_block; all compute runs in one Pallas kernel."""

    def __init__(self, num_classes=10, in_channels=32, out_channels=32,
                 key=jax.random.PRNGKey(0)):
        assert in_channels == out_channels, \
            "GRU state update requires in_channels == out_channels"
        self.C = in_channels
        self.num_classes = num_classes

        def linear_init(k, fan_in, fan_out):
            # PyTorch nn.Linear default: U(-1/sqrt(fan_in), 1/sqrt(fan_in)).
            kw, kb = jax.random.split(k)
            bound = 1.0 / (fan_in ** 0.5)
            w = jax.random.uniform(kw, (fan_in, fan_out), jnp.float32,
                                   -bound, bound)       # (in, out) layout
            b = jax.random.uniform(kb, (fan_out,), jnp.float32, -bound, bound)
            return w, b

        keys = jax.random.split(key, 7)
        self.wxz, self.bxz = linear_init(keys[0], in_channels, out_channels)
        self.whz, self.bhz = linear_init(keys[1], in_channels, out_channels)
        self.wxr, self.bxr = linear_init(keys[2], in_channels, out_channels)
        self.whr, self.bhr = linear_init(keys[3], in_channels, out_channels)
        self.wt,  self.bt  = linear_init(keys[4], in_channels, out_channels)
        self.wu,  self.bu  = linear_init(keys[5], in_channels, out_channels)
        self.wout, self.bout = linear_init(keys[6], out_channels, num_classes)

        # ---- pack + pad for the kernel (done once) ----
        C, NC = in_channels, num_classes
        self.Cp = Cp = _round_up(C, 128)
        self.Np = Np = _round_up(NC, 128)

        def pad2(w, r, c):
            return jnp.pad(w, ((0, r - w.shape[0]), (0, c - w.shape[1])))

        def pad1(b, n):
            return jnp.pad(b, (0, n - b.shape[0]))

        # Fused gate weight: rows = [x | h], cols = [z | r | t], each block
        # individually padded to (Cp, Cp) so gate slices land on 128-lane
        # boundaries inside the kernel.
        top = jnp.concatenate([pad2(self.wxz, Cp, Cp),
                               pad2(self.wxr, Cp, Cp),
                               pad2(self.wt,  Cp, Cp)], axis=1)        # (Cp, 3Cp)
        bot = jnp.concatenate([pad2(self.whz, Cp, Cp),
                               pad2(self.whr, Cp, Cp),
                               jnp.zeros((Cp, Cp), jnp.float32)], axis=1)
        self.wg = jnp.concatenate([top, bot], axis=0).astype(jnp.bfloat16)  # (2Cp,3Cp)

        self.wu_p = pad2(self.wu, Cp, Cp).astype(jnp.bfloat16)
        self.wo_p = pad2(self.wout, Cp, Np).astype(jnp.bfloat16)
        self.bg = jnp.concatenate([pad1(self.bxz + self.bhz, Cp),
                                   pad1(self.bxr + self.bhr, Cp),
                                   pad1(self.bt + self.bu, Cp)]
                                  ).reshape(1, 3 * Cp).astype(jnp.float32)
        self.bo = pad1(self.bout, Np).reshape(1, Np).astype(jnp.float32)

    # Padded fast path for recurrences: inputs/outputs stay in the (B, Cp)
    # lane-padded layout, so no per-step pad/slice HBM traffic is emitted.
    # Padded lanes of h_t are exactly 0, so feeding h back padded is safe.
    def step_padded(self, x_pad, h_pad):
        return gru_block_forward(x_pad, h_pad, self.wg, self.wu_p, self.wo_p,
                                 self.bg, self.bo)

    def __call__(self, x, h_t_1):
        x = x.astype(jnp.float32)
        h = h_t_1.astype(jnp.float32)
        if self.C != self.Cp:   # static check; no-op when C is already 128-aligned
            x = jnp.pad(x, ((0, 0), (0, self.Cp - self.C)))
            h = jnp.pad(h, ((0, 0), (0, self.Cp - self.C)))
        y_pad, h_pad = self.step_padded(x, h)
        return y_pad[:, :self.num_classes], h_pad[:, :self.C]


# --------------------------- pure-JAX f32 reference --------------------------
def _ref_forward(blk, x, h):
    lin = lambda a, w, b: a @ w + b
    z = jax.nn.sigmoid(lin(x, blk.wxz, blk.bxz) + lin(h, blk.whz, blk.bhz))
    r = jax.nn.sigmoid(lin(x, blk.wxr, blk.bxr) + lin(h, blk.whr, blk.bhr))
    h_hat = jnp.tanh(lin(x, blk.wt, blk.bt) + lin(r * h, blk.wu, blk.bu))
    h_t = (1.0 - z) * h + z * h_hat
    y = lin(h_t, blk.wout, blk.bout)
    return y, h_t


if __name__ == "__main__":
    key = jax.random.PRNGKey(0)
    kx, kh, kp = jax.random.split(key, 3)

    B, C, NCLS = 8, 32, 10
    x = jax.random.normal(kx, (B, C), jnp.float32)
    h0 = jax.random.normal(kh, (B, C), jnp.float32)

    block = GRUBlockPallas(num_classes=NCLS, in_channels=C, out_channels=C, key=kp)

    y, h_t = block(x, h0)
    y, h_t = jax.block_until_ready((y, h_t))
    assert y.shape == (B, NCLS), y.shape
    assert h_t.shape == (B, C), h_t.shape

    y_ref, h_ref = _ref_forward(block, x, h0)
    # bf16 matmul operands with f32 accumulation -> loose-ish tolerance vs f32 ref.
    assert jnp.allclose(h_t, h_ref, atol=2e-2, rtol=2e-2), \
        float(jnp.max(jnp.abs(h_t - h_ref)))
    assert jnp.allclose(y, y_ref, atol=2e-2, rtol=2e-2), \
        float(jnp.max(jnp.abs(y - y_ref)))

    # Exercise the padded (recurrent) fast path: must match the sliced path.
    xp = jnp.pad(x, ((0, 0), (0, block.Cp - C)))
    hp = jnp.pad(h0, ((0, 0), (0, block.Cp - C)))
    y2_pad, h2_pad = jax.block_until_ready(block.step_padded(xp, hp))
    assert jnp.allclose(y2_pad[:, :NCLS], y, atol=1e-6)
    assert jnp.allclose(h2_pad[:, :C], h_t, atol=1e-6)
    assert jnp.allclose(h2_pad[:, C:], 0.0)   # padded lanes stay exactly 0

    print("KERNEL_OK")
</pallas_src>

<mosaic_0001>
module attributes {stable_mosaic.version = 11 : i64} {
  func.func @_gru_kernel(%arg0: i32, %arg1: memref<8x128xf32, #tpu.memory_space<vmem>>, %arg2: memref<8x128xf32, #tpu.memory_space<vmem>>, %arg3: memref<256x384xbf16, #tpu.memory_space<vmem>>, %arg4: memref<128x128xbf16, #tpu.memory_space<vmem>>, %arg5: memref<128x128xbf16, #tpu.memory_space<vmem>>, %arg6: memref<1x384xf32, #tpu.memory_space<vmem>>, %arg7: memref<1x128xf32, #tpu.memory_space<vmem>>, %arg8: memref<8x128xf32, #tpu.memory_space<vmem>>, %arg9: memref<8x128xf32, #tpu.memory_space<vmem>>) attributes {dimension_semantics = [#tpu.dimension_semantics<parallel>], iteration_bounds = array<i64: 1>, scalar_prefetch = 0 : i64, scratch_operands = 0 : i64, tpu.core_type = #tpu.core_type<tc>, window_params = [{transform_indices = @transform_0, window_bounds = array<i64: 8, 128>}, {transform_indices = @transform_1, window_bounds = array<i64: 8, 128>}, {pipeline_mode = #tpu.pipeline_mode<synchronous>, transform_indices = @transform_2, window_bounds = array<i64: 256, 384>}, {pipeline_mode = #tpu.pipeline_mode<synchronous>, transform_indices = @transform_3, window_bounds = array<i64: 128, 128>}, {pipeline_mode = #tpu.pipeline_mode<synchronous>, transform_indices = @transform_4, window_bounds = array<i64: 128, 128>}, {pipeline_mode = #tpu.pipeline_mode<synchronous>, transform_indices = @transform_5, window_bounds = array<i64: 1, 384>}, {pipeline_mode = #tpu.pipeline_mode<synchronous>, transform_indices = @transform_6, window_bounds = array<i64: 1, 128>}, {transform_indices = @transform_7, window_bounds = array<i64: 8, 128>}, {transform_indices = @transform_8, window_bounds = array<i64: 8, 128>}]} {
    %c0 = arith.constant 0 : index
    %c0_0 = arith.constant 0 : index
    %0 = vector.load %arg1[%c0, %c0_0] : memref<8x128xf32, #tpu.memory_space<vmem>>, vector<8x128xf32>
    %c0_1 = arith.constant 0 : index
    %c0_2 = arith.constant 0 : index
    %1 = vector.load %arg2[%c0_1, %c0_2] : memref<8x128xf32, #tpu.memory_space<vmem>>, vector<8x128xf32>
    %2 = arith.truncf %0 : vector<8x128xf32> to vector<8x128xbf16>
    %3 = arith.truncf %1 : vector<8x128xf32> to vector<8x128xbf16>
    %4 = tpu.concatenate %2, %3 in 1 : vector<8x128xbf16>, vector<8x128xbf16> -> vector<8x256xbf16>
    %c0_3 = arith.constant 0 : index
    %c0_4 = arith.constant 0 : index
    %5 = vector.load %arg3[%c0_3, %c0_4] : memref<256x384xbf16, #tpu.memory_space<vmem>>, vector<256x384xbf16>
    %cst = arith.constant dense<0.000000e+00> : vector<8x384xf32>
    %6 = tpu.matmul %4, %5, %cst {dimension_numbers = #tpu.dot_dimension_numbers<[1], [0], [0], [1], [0, 0, 1, 1], [], []>} : vector<8x256xbf16>, vector<256x384xbf16>, vector<8x384xf32> -> vector<8x384xf32>
    %c0_5 = arith.constant 0 : index
    %c0_6 = arith.constant 0 : index
    %7 = vector.load %arg6[%c0_5, %c0_6] : memref<1x384xf32, #tpu.memory_space<vmem>>, vector<1x384xf32>
    %8 = vector.broadcast %7 : vector<1x384xf32> to vector<8x384xf32>
    %9 = arith.addf %6, %8 : vector<8x384xf32>
    %10 = vector.extract_strided_slice %9 {offsets = [0, 0], sizes = [8, 128], strides = [1, 1]} : vector<8x384xf32> to vector<8x128xf32>
    %cst_7 = arith.constant 5.000000e-01 : f32
    %11 = vector.broadcast %cst_7 : f32 to vector<8x128xf32>
    %12 = arith.mulf %11, %10 : vector<8x128xf32>
    %13 = math.tanh %12 : vector<8x128xf32>
    %cst_8 = arith.constant 1.000000e+00 : f32
    %14 = vector.broadcast %cst_8 : f32 to vector<8x128xf32>
    %15 = arith.addf %13, %14 : vector<8x128xf32>
    %cst_9 = arith.constant 5.000000e-01 : f32
    %16 = vector.broadcast %cst_9 : f32 to vector<8x128xf32>
    %17 = arith.mulf %16, %15 : vector<8x128xf32>
    %18 = vector.extract_strided_slice %9 {offsets = [0, 128], sizes = [8, 128], strides = [1, 1]} : vector<8x384xf32> to vector<8x128xf32>
    %cst_10 = arith.constant 5.000000e-01 : f32
    %19 = vector.broadcast %cst_10 : f32 to vector<8x128xf32>
    %20 = arith.mulf %19, %18 : vector<8x128xf32>
    %21 = math.tanh %20 : vector<8x128xf32>
    %cst_11 = arith.constant 1.000000e+00 : f32
    %22 = vector.broadcast %cst_11 : f32 to vector<8x128xf32>
    %23 = arith.addf %21, %22 : vector<8x128xf32>
    %cst_12 = arith.constant 5.000000e-01 : f32
    %24 = vector.broadcast %cst_12 : f32 to vector<8x128xf32>
    %25 = arith.mulf %24, %23 : vector<8x128xf32>
    %26 = vector.extract_strided_slice %9 {offsets = [0, 256], sizes = [8, 128], strides = [1, 1]} : vector<8x384xf32> to vector<8x128xf32>
    %27 = arith.mulf %25, %1 : vector<8x128xf32>
    %28 = arith.truncf %27 : vector<8x128xf32> to vector<8x128xbf16>
    %c0_13 = arith.constant 0 : index
    %c0_14 = arith.constant 0 : index
    %29 = vector.load %arg4[%c0_13, %c0_14] : memref<128x128xbf16, #tpu.memory_space<vmem>>, vector<128x128xbf16>
    %cst_15 = arith.constant dense<0.000000e+00> : vector<8x128xf32>
    %30 = tpu.matmul %28, %29, %cst_15 {dimension_numbers = #tpu.dot_dimension_numbers<[1], [0], [0], [1], [0, 0, 1, 1], [], []>} : vector<8x128xbf16>, vector<128x128xbf16>, vector<8x128xf32> -> vector<8x128xf32>
    %31 = arith.addf %26, %30 : vector<8x128xf32>
    %32 = math.tanh %31 : vector<8x128xf32>
    %33 = arith.subf %32, %1 : vector<8x128xf32>
    %34 = arith.mulf %17, %33 : vector<8x128xf32>
    %35 = arith.addf %1, %34 : vector<8x128xf32>
    %c0_16 = arith.constant 0 : index
    %c0_17 = arith.constant 0 : index
    %36 = vector.load %arg8[%c0_16, %c0_17] : memref<8x128xf32, #tpu.memory_space<vmem>>, vector<8x128xf32>
    tpu.vector_store %arg8[%c0_16, %c0_17], %35 {strides = array<i32>} : memref<8x128xf32, #tpu.memory_space<vmem>>, vector<8x128xf32>,
    %37 = arith.truncf %35 : vector<8x128xf32> to vector<8x128xbf16>
    %c0_18 = arith.constant 0 : index
    %c0_19 = arith.constant 0 : index
    %38 = vector.load %arg5[%c0_18, %c0_19] : memref<128x128xbf16, #tpu.memory_space<vmem>>, vector<128x128xbf16>
    %cst_20 = arith.constant dense<0.000000e+00> : vector<8x128xf32>
    %39 = tpu.matmul %37, %38, %cst_20 {dimension_numbers = #tpu.dot_dimension_numbers<[1], [0], [0], [1], [0, 0, 1, 1], [], []>} : vector<8x128xbf16>, vector<128x128xbf16>, vector<8x128xf32> -> vector<8x128xf32>
    %c0_21 = arith.constant 0 : index
    %c0_22 = arith.constant 0 : index
    %40 = vector.load %arg7[%c0_21, %c0_22] : memref<1x128xf32, #tpu.memory_space<vmem>>, vector<1x128xf32>
    %41 = vector.broadcast %40 : vector<1x128xf32> to vector<8x128xf32>
    %42 = arith.addf %39, %41 : vector<8x128xf32>
    %c0_23 = arith.constant 0 : index
    %c0_24 = arith.constant 0 : index
    %43 = vector.load %arg9[%c0_23, %c0_24] : memref<8x128xf32, #tpu.memory_space<vmem>>, vector<8x128xf32>
    tpu.vector_store %arg9[%c0_23, %c0_24], %42 {strides = array<i32>} : memref<8x128xf32, #tpu.memory_space<vmem>>, vector<8x128xf32>,
    return
  }
  func.func @transform_0(%arg0: i32) -> (i32, i32) {
    %c0_i32 = arith.constant 0 : i32
    %c0_i32_0 = arith.constant 0 : i32
    return %arg0, %c0_i32 : i32, i32
  }
  func.func @transform_1(%arg0: i32) -> (i32, i32) {
    %c0_i32 = arith.constant 0 : i32
    %c0_i32_0 = arith.constant 0 : i32
    return %arg0, %c0_i32 : i32, i32
  }
  func.func @transform_2(%arg0: i32) -> (i32, i32) {
    %c0_i32 = arith.constant 0 : i32
    %c0_i32_0 = arith.constant 0 : i32
    %c0_i32_1 = arith.constant 0 : i32
    return %c0_i32, %c0_i32_0 : i32, i32
  }
  func.func @transform_3(%arg0: i32) -> (i32, i32) {
    %c0_i32 = arith.constant 0 : i32
    %c0_i32_0 = arith.constant 0 : i32
    %c0_i32_1 = arith.constant 0 : i32
    return %c0_i32, %c0_i32_0 : i32, i32
  }
  func.func @transform_4(%arg0: i32) -> (i32, i32) {
    %c0_i32 = arith.constant 0 : i32
    %c0_i32_0 = arith.constant 0 : i32
    %c0_i32_1 = arith.constant 0 : i32
    return %c0_i32, %c0_i32_0 : i32, i32
  }
  func.func @transform_5(%arg0: i32) -> (i32, i32) {
    %c0_i32 = arith.constant 0 : i32
    %c0_i32_0 = arith.constant 0 : i32
    %c0_i32_1 = arith.constant 0 : i32
    return %c0_i32, %c0_i32_0 : i32, i32
  }
  func.func @transform_6(%arg0: i32) -> (i32, i32) {
    %c0_i32 = arith.constant 0 : i32
    %c0_i32_0 = arith.constant 0 : i32
    %c0_i32_1 = arith.constant 0 : i32
    return %c0_i32, %c0_i32_0 : i32, i32
  }
  func.func @transform_7(%arg0: i32) -> (i32, i32) {
    %c0_i32 = arith.constant 0 : i32
    %c0_i32_0 = arith.constant 0 : i32
    return %arg0, %c0_i32 : i32, i32
  }
  func.func @transform_8(%arg0: i32) -> (i32, i32) {
    %c0_i32 = arith.constant 0 : i32
    %c0_i32_0 = arith.constant 0 : i32
    return %arg0, %c0_i32 : i32, i32
  }
}

</mosaic_0001>

<llo_original>
// kernel: tpu_custom_call.1
$region0: #{tpu_custom_call.1}
  #allocation0 [shape = 'u32[]', space=smem, size = 0x4, offset = 0x4, fixed_abs, tag = 'smem constant byte address 0x4 - core index']
  #allocation1 [shape = 'u32[144,128]{1,0:T(1,128)}', space=vmem, size = 0x12000, scoped, tag = 'internal scratch']
  %s0 = inlined_call_operand.hbm [shape: f32[8,128], index: 0, kind: input, shape index: {}]
  %s1 = inlined_call_operand.hbm [shape: f32[8,128], index: 1, kind: input, shape index: {}]
  %s2 = inlined_call_operand.hbm [shape: bf16[256,384], index: 2, kind: input, shape index: {}]
  %s3 = inlined_call_operand.hbm [shape: bf16[128,128], index: 3, kind: input, shape index: {}]
  %s4 = inlined_call_operand.hbm [shape: bf16[128,128], index: 4, kind: input, shape index: {}]
  %s5 = inlined_call_operand.vmem [shape: f32[1,384], index: 5, kind: input, shape index: {}]
  %s6 = inlined_call_operand.vmem [shape: f32[1,128], index: 6, kind: input, shape index: {}]
  %s7 = inlined_call_operand.hbm [shape: f32[8,128], index: 7, kind: output, shape index: {0}]
  %s8 = inlined_call_operand.hbm [shape: f32[8,128], index: 8, kind: output, shape index: {1}]
  %9 = xla_tuple %s7, %s8
  %s10 = sld [smem:[#allocation0]]
  $region66: #{tpu_custom_call.1} parent=0
    _
  %s12 = ssub.s32 1, %s10
  %s13 = scalar_select 0, %s12, %s10
  $region1: #{tpu_custom_call.1} parent=0
    #allocation2 [shape = 'u8[4096]{0}', space=vmem, size = 0x1000, scoped, tag = 'input window, operand 0, single buffered']
    #allocation3 [shape = 's32[1]{0}', space=sflag, size = 0x4, scoped, tag = 'scoped memory for tpu_custom_call.1']
    #allocation4 [shape = 's32[1]{0}', space=sflag, size = 0x4, scoped, tag = 'scoped memory for tpu_custom_call.1']
    #allocation5 [shape = 'u8[4096]{0}', space=vmem, size = 0x1000, scoped, tag = 'input window, operand 1, single buffered']
    #allocation6 [shape = 's32[1]{0}', space=sflag, size = 0x4, scoped, tag = 'scoped memory for tpu_custom_call.1']
    #allocation7 [shape = 'u8[196608]{0}', space=vmem, size = 0x30000, scoped, tag = 'input window, operand 2, single buffered']
    #allocation8 [shape = 'u8[32768]{0}', space=vmem, size = 0x8000, scoped, tag = 'input window, operand 3, single buffered']
    #allocation9 [shape = 's32[1]{0}', space=sflag, size = 0x4, scoped, tag = 'scoped memory for tpu_custom_call.1']
    #allocation10 [shape = 'u8[32768]{0}', space=vmem, size = 0x8000, scoped, tag = 'input window, operand 4, single buffered']
    #allocation11 [shape = 'u8[4096]{0}', space=vmem, size = 0x1000, scoped, tag = 'output window, operand 0, single buffered']
    #allocation12 [shape = 'u8[4096]{0}', space=vmem, size = 0x1000, scoped, tag = 'output window, operand 1, single buffered']
    #allocation13 [shape = 's32[1]{0}', space=sflag, size = 0x4, scoped, tag = 'scoped memory for tpu_custom_call.1']
    %14 = vsyncpa [#allocation3], 0
    %15 = vsyncpa [#allocation6], 0
    %16 = vsyncpa [#allocation9], 0
    %17 = vsyncpa [#allocation4], 0
    %18 = vsyncpa [#allocation13], 0
    // Predicated region
    $region2: #{tpu_custom_call.1} parent=1 // pred_check
      _
    $region3: #{tpu_custom_call.1} parent=1 // pred_check_branch
      %20 = sbr.rel (0) target = $region5
    $region4: #{tpu_custom_call.1} parent=1 // pred_region
      %s22 = ssub.s32 128, 128
      %23 = vsyncadd [#allocation3], %s22
      %s25 = sshll.u32 [#allocation2], 4
      %s26 = int_to_ptr.vmem [resolvable:$true] %s25
      %28 = dma.hbm_to_vmem [thread:$0]  %s0, 128, %s26, [#allocation3]
    $region5: #{tpu_custom_call.1} parent=1 // pred_fallthru
      _
    // Predicated region
    $region6: #{tpu_custom_call.1} parent=1 // pred_check
      _
    $region7: #{tpu_custom_call.1} parent=1 // pred_check_branch
      %30 = sbr.rel (0) target = $region9
    $region8: #{tpu_custom_call.1} parent=1 // pred_region
      %s32 = ssub.s32 128, 128
      %33 = vsyncadd [#allocation6], %s32
      %s35 = sshll.u32 [#allocation5], 4
      %s36 = int_to_ptr.vmem [resolvable:$true] %s35
      %38 = dma.hbm_to_vmem [thread:$0]  %s1, 128, %s36, [#allocation6]
    $region9: #{tpu_custom_call.1} parent=1 // pred_fallthru
      _
    // Predicated region
    $region10: #{tpu_custom_call.1} parent=1 // pred_check
      _
    $region11: #{tpu_custom_call.1} parent=1 // pred_check_branch
      %40 = sbr.rel (0) target = $region13
    $region12: #{tpu_custom_call.1} parent=1 // pred_region
      %s42 = ssub.s32 6144, 6144
      %43 = vsyncadd [#allocation6], %s42
      %s44 = sshll.u32 [#allocation7], 4
      %s45 = int_to_ptr.vmem [resolvable:$true] %s44
      %50 = dma.hbm_to_vmem [thread:$0]  %s2, 6144, %s45, [#allocation6], 192, 192, 12
    $region13: #{tpu_custom_call.1} parent=1 // pred_fallthru
      _
    // Predicated region
    $region14: #{tpu_custom_call.1} parent=1 // pred_check
      _
    $region15: #{tpu_custom_call.1} parent=1 // pred_check_branch
      %52 = sbr.rel (0) target = $region17
    $region16: #{tpu_custom_call.1} parent=1 // pred_region
      %s54 = ssub.s32 1024, 1024
      %55 = vsyncadd [#allocation9], %s54
      %s56 = sshll.u32 [#allocation8], 4
      %s57 = int_to_ptr.vmem [resolvable:$true] %s56
      %62 = dma.hbm_to_vmem [thread:$0]  %s3, 1024, %s57, [#allocation9], 64, 64, 4
    $region17: #{tpu_custom_call.1} parent=1 // pred_fallthru
      _
    // Predicated region
    $region18: #{tpu_custom_call.1} parent=1 // pred_check
      _
    $region19: #{tpu_custom_call.1} parent=1 // pred_check_branch
      %64 = sbr.rel (0) target = $region21
    $region20: #{tpu_custom_call.1} parent=1 // pred_region
      %s66 = ssub.s32 1024, 1024
      %67 = vsyncadd [#allocation9], %s66
      %s68 = sshll.u32 [#allocation10], 4
      %s69 = int_to_ptr.vmem [resolvable:$true] %s68
      %74 = dma.hbm_to_vmem [thread:$0]  %s4, 1024, %s69, [#allocation9], 64, 64, 4
    $region21: #{tpu_custom_call.1} parent=1 // pred_fallthru
      _
    // Predicated region
    $region22: #{tpu_custom_call.1} parent=1 // pred_check
      _
    $region23: #{tpu_custom_call.1} parent=1 // pred_check_branch
      %76 = sbr.rel (0) target = $region25
    $region24: #{tpu_custom_call.1} parent=1 // pred_region
      _
    $region25: #{tpu_custom_call.1} parent=1 // pred_fallthru
      _
    // Predicated region
    $region26: #{tpu_custom_call.1} parent=1 // pred_check
      _
    $region27: #{tpu_custom_call.1} parent=1 // pred_check_branch
      %78 = sbr.rel (0) target = $region29
    $region28: #{tpu_custom_call.1} parent=1 // pred_region
      _
    $region29: #{tpu_custom_call.1} parent=1 // pred_fallthru
      _
    // Predicated region
    $region30: #{tpu_custom_call.1} parent=1 // pred_check
      _
    $region31: #{tpu_custom_call.1} parent=1 // pred_check_branch
      %80 = sbr.rel (0) target = $region33
    $region32: #{tpu_custom_call.1} parent=1 // pred_region
      %81 = dma.done [#allocation3], 128
    $region33: #{tpu_custom_call.1} parent=1 // pred_fallthru
      _
    // Predicated region
    $region34: #{tpu_custom_call.1} parent=1 // pred_check
      _
    $region35: #{tpu_custom_call.1} parent=1 // pred_check_branch
      %83 = sbr.rel (0) target = $region37
    $region36: #{tpu_custom_call.1} parent=1 // pred_region
      %84 = dma.done [#allocation6], 128
    $region37: #{tpu_custom_call.1} parent=1 // pred_fallthru
      _
    // Predicated region
    $region38: #{tpu_custom_call.1} parent=1 // pred_check
      _
    $region39: #{tpu_custom_call.1} parent=1 // pred_check_branch
      %86 = sbr.rel (0) target = $region41
    $region40: #{tpu_custom_call.1} parent=1 // pred_region
      %87 = dma.done [#allocation6], 6144
    $region41: #{tpu_custom_call.1} parent=1 // pred_fallthru
      _
    // Predicated region
    $region42: #{tpu_custom_call.1} parent=1 // pred_check
      _
    $region43: #{tpu_custom_call.1} parent=1 // pred_check_branch
      %89 = sbr.rel (0) target = $region45
    $region44: #{tpu_custom_call.1} parent=1 // pred_region
      %90 = dma.done [#allocation9], 1024
    $region45: #{tpu_custom_call.1} parent=1 // pred_fallthru
      _
    // Predicated region
    $region46: #{tpu_custom_call.1} parent=1 // pred_check
      _
    $region47: #{tpu_custom_call.1} parent=1 // pred_check_branch
      %92 = sbr.rel (0) target = $region49
    $region48: #{tpu_custom_call.1} parent=1 // pred_region
      %93 = dma.done [#allocation9], 1024
    $region49: #{tpu_custom_call.1} parent=1 // pred_fallthru
      _
    %v95 = vld [vmem:[#allocation2] sm:$0xff]
    %v96 = vld [vmem:[#allocation5] sm:$0xff]
    %v97 = vpack.c.bf16 %v95, %v95
    %v98 = vpack.c.bf16 %v96, %v96
    %v99 = vld [vmem:[#allocation7] sm:$0xff]
    %v100 = vld [vmem:[#allocation7 + $0x8] sm:$0xf]
    %v101 = vld [vmem:[#allocation7 + $0xc] sm:$0xff]
    %v102 = vld [vmem:[#allocation7 + $0x14] sm:$0xf]
    %v103 = vld [vmem:[#allocation7 + $0x18] sm:$0xff]
    %v104 = vld [vmem:[#allocation7 + $0x20] sm:$0xf]
    %v105 = vld [vmem:[#allocation7 + $0x24] sm:$0xff]
    %v106 = vld [vmem:[#allocation7 + $0x2c] sm:$0xf]
    %v107 = vld [vmem:[#allocation7 + $0x30] sm:$0xff]
    %v108 = vld [vmem:[#allocation7 + $0x38] sm:$0xf]
    %v109 = vld [vmem:[#allocation7 + $0x3c] sm:$0xff]
    %v110 = vld [vmem:[#allocation7 + $0x44] sm:$0xf]
    %v111 = vld [vmem:[#allocation7 + $0x48] sm:$0xff]
    %v112 = vld [vmem:[#allocation7 + $0x50] sm:$0xf]
    %v113 = vld [vmem:[#allocation7 + $0x54] sm:$0xff]
    %v114 = vld [vmem:[#allocation7 + $0x5c] sm:$0xf]
    %v115 = vld [vmem:[#allocation7 + $0x60] sm:$0xff]
    %v116 = vld [vmem:[#allocation7 + $0x68] sm:$0xf]
    %v117 = vld [vmem:[#allocation7 + $0x6c] sm:$0xff]
    %v118 = vld [vmem:[#allocation7 + $0x74] sm:$0xf]
    %v119 = vld [vmem:[#allocation7 + $0x78] sm:$0xff]
    %v120 = vld [vmem:[#allocation7 + $0x80] sm:$0xf]
    %v121 = vld [vmem:[#allocation7 + $0x84] sm:$0xff]
    %v122 = vld [vmem:[#allocation7 + $0x8c] sm:$0xf]
    %v123 = vld [vmem:[#allocation7 + $0x90] sm:$0xff]
    %v124 = vld [vmem:[#allocation7 + $0x98] sm:$0xf]
    %v125 = vld [vmem:[#allocation7 + $0x9c] sm:$0xff]
    %v126 = vld [vmem:[#allocation7 + $0xa4] sm:$0xf]
    %v127 = vld [vmem:[#allocation7 + $0xa8] sm:$0xff]
    %v128 = vld [vmem:[#allocation7 + $0xb0] sm:$0xf]
    %v129 = vld [vmem:[#allocation7 + $0xb4] sm:$0xff]
    %v130 = vld [vmem:[#allocation7 + $0xbc] sm:$0xf]
    %v131 = vld [vmem:[#allocation7 + $0xc0] sm:$0xff]
    %v132 = vld [vmem:[#allocation7 + $0xc8] sm:$0xf]
    %v133 = vld [vmem:[#allocation7 + $0xcc] sm:$0xff]
    %v134 = vld [vmem:[#allocation7 + $0xd4] sm:$0xf]
    %v135 = vld [vmem:[#allocation7 + $0xd8] sm:$0xff]
    %v136 = vld [vmem:[#allocation7 + $0xe0] sm:$0xf]
    %v137 = vld [vmem:[#allocation7 + $0xe4] sm:$0xff]
    %v138 = vld [vmem:[#allocation7 + $0xec] sm:$0xf]
    %v139 = vld [vmem:[#allocation7 + $0xf0] sm:$0xff]
    %v140 = vld [vmem:[#allocation7 + $0xf8] sm:$0xf]
    %v141 = vld [vmem:[#allocation7 + $0xfc] sm:$0xff]
    %v142 = vld [vmem:[#allocation7 + $0x104] sm:$0xf]
    %v143 = vld [vmem:[#allocation7 + $0x108] sm:$0xff]
    %v144 = vld [vmem:[#allocation7 + $0x110] sm:$0xf]
    %v145 = vld [vmem:[#allocation7 + $0x114] sm:$0xff]
    %v146 = vld [vmem:[#allocation7 + $0x11c] sm:$0xf]
    %v147 = vld [vmem:[#allocation7 + $0x120] sm:$0xff]
    %v148 = vld [vmem:[#allocation7 + $0x128] sm:$0xf]
    %v149 = vld [vmem:[#allocation7 + $0x12c] sm:$0xff]
    %v150 = vld [vmem:[#allocation7 + $0x134] sm:$0xf]
    %v151 = vld [vmem:[#allocation7 + $0x138] sm:$0xff]
    %v152 = vld [vmem:[#allocation7 + $0x140] sm:$0xf]
    %v153 = vld [vmem:[#allocation7 + $0x144] sm:$0xff]
    %v154 = vld [vmem:[#allocation7 + $0x14c] sm:$0xf]
    %v155 = vld [vmem:[#allocation7 + $0x150] sm:$0xff]
    %v156 = vld [vmem:[#allocation7 + $0x158] sm:$0xf]
    %v157 = vld [vmem:[#allocation7 + $0x15c] sm:$0xff]
    %v158 = vld [vmem:[#allocation7 + $0x164] sm:$0xf]
    %v159 = vld [vmem:[#allocation7 + $0x168] sm:$0xff]
    %v160 = vld [vmem:[#allocation7 + $0x170] sm:$0xf]
    %v161 = vld [vmem:[#allocation7 + $0x174] sm:$0xff]
    %v162 = vld [vmem:[#allocation7 + $0x17c] sm:$0xf]
    %v163 = vld [vmem:[%s5] sm:$0x7]
    %v165 = vlaneseq
    %v166 = vshrl.u32 %v165, 7
    %v167 = vsub.s32 0, %v166
    %v168 = vrot.slane %v163, %v167
    %v169 = vlaneseq
    %v170 = vshrl.u32 %v169, 7
    %v171 = vsub.s32 1, %v170
    %v172 = vrot.slane %v163, %v171
    %v173 = vlaneseq
    %v174 = vshrl.u32 %v173, 7
    %v175 = vsub.s32 2, %v174
    %v176 = vrot.slane %v163, %v175
    %v244 = vunpack.c.l.b16 %v99
    %v245 = vunpack.c.h.b16 %v99
    %v246 = vunpack.c.l.b16 %v100
    %v247 = vunpack.c.l.b16 %v101
    %v248 = vunpack.c.h.b16 %v101
    %v249 = vunpack.c.l.b16 %v102
    %v250 = vunpack.c.l.b16 %v103
    %v251 = vunpack.c.h.b16 %v103
    %v252 = vunpack.c.l.b16 %v104
    %v253 = vunpack.c.l.b16 %v105
    %v254 = vunpack.c.h.b16 %v105
    %v255 = vunpack.c.l.b16 %v106
    %v256 = vunpack.c.l.b16 %v107
    %v257 = vunpack.c.h.b16 %v107
    %v258 = vunpack.c.l.b16 %v108
    %v259 = vunpack.c.l.b16 %v109
    %v260 = vunpack.c.h.b16 %v109
    %v261 = vunpack.c.l.b16 %v110
    %v262 = vunpack.c.l.b16 %v111
    %v263 = vunpack.c.h.b16 %v111
    %v264 = vunpack.c.l.b16 %v112
    %v265 = vunpack.c.l.b16 %v113
    %v266 = vunpack.c.h.b16 %v113
    %v267 = vunpack.c.l.b16 %v114
    %v268 = vunpack.c.l.b16 %v115
    %v269 = vunpack.c.h.b16 %v115
    %v270 = vunpack.c.l.b16 %v116
    %v271 = vunpack.c.l.b16 %v117
    %v272 = vunpack.c.h.b16 %v117
    %v273 = vunpack.c.l.b16 %v118
    %v274 = vunpack.c.l.b16 %v119
    %v275 = vunpack.c.h.b16 %v119
    %v276 = vunpack.c.l.b16 %v120
    %v277 = vunpack.c.l.b16 %v121
    %v278 = vunpack.c.h.b16 %v121
    %v279 = vunpack.c.l.b16 %v122
    %v280 = vunpack.c.l.b16 %v123
    %v281 = vunpack.c.h.b16 %v123
    %v282 = vunpack.c.l.b16 %v124
    %v283 = vunpack.c.l.b16 %v125
    %v284 = vunpack.c.h.b16 %v125
    %v285 = vunpack.c.l.b16 %v126
    %v286 = vunpack.c.l.b16 %v127
    %v287 = vunpack.c.h.b16 %v127
    %v288 = vunpack.c.l.b16 %v128
    %v289 = vunpack.c.l.b16 %v129
    %v290 = vunpack.c.h.b16 %v129
    %v291 = vunpack.c.l.b16 %v130
    %v292 = vunpack.c.l.b16 %v131
    %v293 = vunpack.c.h.b16 %v131
    %v294 = vunpack.c.l.b16 %v132
    %v295 = vunpack.c.l.b16 %v133
    %v296 = vunpack.c.h.b16 %v133
    %v297 = vunpack.c.l.b16 %v134
    %v298 = vunpack.c.l.b16 %v135
    %v299 = vunpack.c.h.b16 %v135
    %v300 = vunpack.c.l.b16 %v136
    %v301 = vunpack.c.l.b16 %v137
    %v302 = vunpack.c.h.b16 %v137
    %v303 = vunpack.c.l.b16 %v138
    %v304 = vunpack.c.l.b16 %v139
    %v305 = vunpack.c.h.b16 %v139
    %v306 = vunpack.c.l.b16 %v140
    %v307 = vunpack.c.l.b16 %v141
    %v308 = vunpack.c.h.b16 %v141
    %v309 = vunpack.c.l.b16 %v142
    %v310 = vunpack.c.l.b16 %v143
    %v311 = vunpack.c.h.b16 %v143
    %v312 = vunpack.c.l.b16 %v144
    %v313 = vunpack.c.l.b16 %v145
    %v314 = vunpack.c.h.b16 %v145
    %v315 = vunpack.c.l.b16 %v146
    %v316 = vunpack.c.l.b16 %v147
    %v317 = vunpack.c.h.b16 %v147
    %v318 = vunpack.c.l.b16 %v148
    %v319 = vunpack.c.l.b16 %v149
    %v320 = vunpack.c.h.b16 %v149
    %v321 = vunpack.c.l.b16 %v150
    %v322 = vunpack.c.l.b16 %v151
    %v323 = vunpack.c.h.b16 %v151
    %v324 = vunpack.c.l.b16 %v152
    %v325 = vunpack.c.l.b16 %v153
    %v326 = vunpack.c.h.b16 %v153
    %v327 = vunpack.c.l.b16 %v154
    %v328 = vunpack.c.l.b16 %v155
    %v329 = vunpack.c.h.b16 %v155
    %v330 = vunpack.c.l.b16 %v156
    %v331 = vunpack.c.l.b16 %v157
    %v332 = vunpack.c.h.b16 %v157
    %v333 = vunpack.c.l.b16 %v158
    %v334 = vunpack.c.l.b16 %v159
    %v335 = vunpack.c.h.b16 %v159
    %v336 = vunpack.c.l.b16 %v160
    %v337 = vunpack.c.l.b16 %v161
    %v338 = vunpack.c.h.b16 %v161
    %v339 = vunpack.c.l.b16 %v162
    %v340 = vpack.c.b16 %v247, %v244
    %v341 = vpack.c.b16 %v248, %v245
    %v342 = vpack.c.b16 %v249, %v246
    %v343 = vpack.c.b16 %v253, %v250
    %v344 = vpack.c.b16 %v254, %v251
    %v345 = vpack.c.b16 %v255, %v252
    %v346 = vpack.c.b16 %v259, %v256
    %v347 = vpack.c.b16 %v260, %v257
    %v348 = vpack.c.b16 %v261, %v258
    %v349 = vpack.c.b16 %v265, %v262
    %v350 = vpack.c.b16 %v266, %v263
    %v351 = vpack.c.b16 %v267, %v264
    %v352 = vpack.c.b16 %v271, %v268
    %v353 = vpack.c.b16 %v272, %v269
    %v354 = vpack.c.b16 %v273, %v270
    %v355 = vpack.c.b16 %v277, %v274
    %v356 = vpack.c.b16 %v278, %v275
    %v357 = vpack.c.b16 %v279, %v276
    %v358 = vpack.c.b16 %v283, %v280
    %v359 = vpack.c.b16 %v284, %v281
    %v360 = vpack.c.b16 %v285, %v282
    %v361 = vpack.c.b16 %v289, %v286
    %v362 = vpack.c.b16 %v290, %v287
    %v363 = vpack.c.b16 %v291, %v288
    %v364 = vpack.c.b16 %v295, %v292
    %v365 = vpack.c.b16 %v296, %v293
    %v366 = vpack.c.b16 %v297, %v294
    %v367 = vpack.c.b16 %v301, %v298
    %v368 = vpack.c.b16 %v302, %v299
    %v369 = vpack.c.b16 %v303, %v300
    %v370 = vpack.c.b16 %v307, %v304
    %v371 = vpack.c.b16 %v308, %v305
    %v372 = vpack.c.b16 %v309, %v306
    %v373 = vpack.c.b16 %v313, %v310
    %v374 = vpack.c.b16 %v314, %v311
    %v375 = vpack.c.b16 %v315, %v312
    %v376 = vpack.c.b16 %v319, %v316
    %v377 = vpack.c.b16 %v320, %v317
    %v378 = vpack.c.b16 %v321, %v318
    %v379 = vpack.c.b16 %v325, %v322
    %v380 = vpack.c.b16 %v326, %v323
    %v381 = vpack.c.b16 %v327, %v324
    %v382 = vpack.c.b16 %v331, %v328
    %v383 = vpack.c.b16 %v332, %v329
    %v384 = vpack.c.b16 %v333, %v330
    %v385 = vpack.c.b16 %v337, %v334
    %v386 = vpack.c.b16 %v338, %v335
    %v387 = vpack.c.b16 %v339, %v336
    %436 = vmatprep.subr.bf16.mxu0 %v341
    %437 = vmatpush1.bf16.msra.mxu0 %v340
    %438 = vmatprep.subr.bf16.mxu0 %v344
    %439 = vmatpush1.bf16.msra.mxu0 %v343
    %440 = vmatprep.subr.bf16.mxu0 %v347
    %441 = vmatpush1.bf16.msra.mxu0 %v346
    %442 = vmatprep.subr.bf16.mxu0 %v350
    %443 = vmatpush1.bf16.msra.mxu0 %v349
    %444 = vmatprep.subr.bf16.mxu0 %v353
    %445 = vmatpush1.bf16.msra.mxu0 %v352
    %446 = vmatprep.subr.bf16.mxu0 %v356
    %447 = vmatpush1.bf16.msra.mxu0 %v355
    %448 = vmatprep.subr.bf16.mxu0 %v359
    %449 = vmatpush1.bf16.msra.mxu0 %v358
    %450 = vmatprep.subr.bf16.mxu0 %v362
    %451 = vmatpush1.bf16.msra.mxu0 %v361
    %452 = vmatprep.subr.bf16.mxu0 %v365
    %453 = vmatpush1.bf16.msra.mxu0 %v364
    %454 = vmatprep.subr.bf16.mxu0 %v368
    %455 = vmatpush1.bf16.msra.mxu0 %v367
    %456 = vmatprep.subr.bf16.mxu0 %v371
    %457 = vmatpush1.bf16.msra.mxu0 %v370
    %458 = vmatprep.subr.bf16.mxu0 %v374
    %459 = vmatpush1.bf16.msra.mxu0 %v373
    %460 = vmatprep.subr.bf16.mxu0 %v377
    %461 = vmatpush1.bf16.msra.mxu0 %v376
    %462 = vmatprep.subr.bf16.mxu0 %v380
    %463 = vmatpush1.bf16.msra.mxu0 %v379
    %464 = vmatprep.subr.bf16.mxu0 %v383
    %465 = vmatpush1.bf16.msra.mxu0 %v382
    %466 = vmatprep.subr.bf16.mxu0 %v386
    %467 = vmatpush1.bf16.msra.mxu0 %v385
    %468 = vmatprep.mubr.bf16.mxu0 %v98
    %469 = vmatmul.mubr.bf16.gmra.mrb[0].mxu0 %v97
    %v470 = vpop.f32.mrb[0].mxu0
    %v471 = vadd.f32 %v168, %v470
    %v472 = vpop.f32.mrb[0].mxu0
    %v473 = vadd.f32 %v172, %v472
    %v474 = vpop.f32.mrb[0].mxu0
    %v475 = vpop.f32.mrb[0].mxu0
    %476 = vdwg.mxu0
    %477 = vmatprep.subr.bf16.mxu0 0
    %478 = vmatpush1.bf16.msra.mxu0 %v342
    %479 = vmatprep.subr.bf16.mxu0 0
    %480 = vmatpush1.bf16.msra.mxu0 %v345
    %481 = vmatprep.subr.bf16.mxu0 0
    %482 = vmatpush1.bf16.msra.mxu0 %v348
    %483 = vmatprep.subr.bf16.mxu0 0
    %484 = vmatpush1.bf16.msra.mxu0 %v351
    %485 = vmatprep.subr.bf16.mxu0 0
    %486 = vmatpush1.bf16.msra.mxu0 %v354
    %487 = vmatprep.subr.bf16.mxu0 0
    %488 = vmatpush1.bf16.msra.mxu0 %v357
    %489 = vmatprep.subr.bf16.mxu0 0
    %490 = vmatpush1.bf16.msra.mxu0 %v360
    %491 = vmatprep.subr.bf16.mxu0 0
    %492 = vmatpush1.bf16.msra.mxu0 %v363
    %493 = vmatprep.subr.bf16.mxu0 0
    %494 = vmatpush1.bf16.msra.mxu0 %v366
    %495 = vmatprep.subr.bf16.mxu0 0
    %496 = vmatpush1.bf16.msra.mxu0 %v369
    %497 = vmatprep.subr.bf16.mxu0 0
    %498 = vmatpush1.bf16.msra.mxu0 %v372
    %499 = vmatprep.subr.bf16.mxu0 0
    %500 = vmatpush1.bf16.msra.mxu0 %v375
    %501 = vmatprep.subr.bf16.mxu0 0
    %502 = vmatpush1.bf16.msra.mxu0 %v378
    %503 = vmatprep.subr.bf16.mxu0 0
    %504 = vmatpush1.bf16.msra.mxu0 %v381
    %505 = vmatprep.subr.bf16.mxu0 0
    %506 = vmatpush1.bf16.msra.mxu0 %v384
    %507 = vmatprep.subr.bf16.mxu0 0
    %508 = vmatpush1.bf16.msra.mxu0 %v387
    %509 = vmatprep.mubr.bf16.mxu0 %v98
    %510 = vmatmul.mubr.bf16.gmra.mrb[0].mxu0 %v97
    %v511 = vpop.f32.mrb[0].mxu0
    %v512 = vadd.f32 %v176, %v511
    %v513 = vpop.f32.mrb[0].mxu0
    %v514 = vpop.f32.mrb[0].mxu0
    %v515 = vpop.f32.mrb[0].mxu0
    %516 = vdwg.mxu0
    %v517 = vmul.f32 %v471, 0.5
    %v518 = vtanh.pop %v517
    %v519 = vadd.f32 %v518, 1.0
    %v520 = vmul.f32 %v519, 0.5
    %v521 = vmul.f32 %v473, 0.5
    %v522 = vtanh.pop %v521
    %v523 = vadd.f32 %v522, 1.0
    %v524 = vmul.f32 %v523, 0.5
    %v525 = vmul.f32 %v524, %v96
    %v526 = vpack.c.bf16 %v525, %v525
    %v527 = vld [vmem:[#allocation8] sm:$0xf]
    %v528 = vld [vmem:[#allocation8 + $0x4] sm:$0xf]
    %v529 = vld [vmem:[#allocation8 + $0x8] sm:$0xf]
    %v530 = vld [vmem:[#allocation8 + $0xc] sm:$0xf]
    %v531 = vld [vmem:[#allocation8 + $0x10] sm:$0xf]
    %v532 = vld [vmem:[#allocation8 + $0x14] sm:$0xf]
    %v533 = vld [vmem:[#allocation8 + $0x18] sm:$0xf]
    %v534 = vld [vmem:[#allocation8 + $0x1c] sm:$0xf]
    %v535 = vld [vmem:[#allocation8 + $0x20] sm:$0xf]
    %v536 = vld [vmem:[#allocation8 + $0x24] sm:$0xf]
    %v537 = vld [vmem:[#allocation8 + $0x28] sm:$0xf]
    %v538 = vld [vmem:[#allocation8 + $0x2c] sm:$0xf]
    %v539 = vld [vmem:[#allocation8 + $0x30] sm:$0xf]
    %v540 = vld [vmem:[#allocation8 + $0x34] sm:$0xf]
    %v541 = vld [vmem:[#allocation8 + $0x38] sm:$0xf]
    %v542 = vld [vmem:[#allocation8 + $0x3c] sm:$0xf]
    %v559 = vunpack.c.l.b16 %v527
    %v560 = vunpack.c.l.b16 %v528
    %v561 = vunpack.c.l.b16 %v529
    %v562 = vunpack.c.l.b16 %v530
    %v563 = vunpack.c.l.b16 %v531
    %v564 = vunpack.c.l.b16 %v532
    %v565 = vunpack.c.l.b16 %v533
    %v566 = vunpack.c.l.b16 %v534
    %v567 = vunpack.c.l.b16 %v535
    %v568 = vunpack.c.l.b16 %v536
    %v569 = vunpack.c.l.b16 %v537
    %v570 = vunpack.c.l.b16 %v538
    %v571 = vunpack.c.l.b16 %v539
    %v572 = vunpack.c.l.b16 %v540
    %v573 = vunpack.c.l.b16 %v541
    %v574 = vunpack.c.l.b16 %v542
    %v575 = vpack.c.b16 %v560, %v559
    %v576 = vpack.c.b16 %v562, %v561
    %v577 = vpack.c.b16 %v564, %v563
    %v578 = vpack.c.b16 %v566, %v565
    %v579 = vpack.c.b16 %v568, %v567
    %v580 = vpack.c.b16 %v570, %v569
    %v581 = vpack.c.b16 %v572, %v571
    %v582 = vpack.c.b16 %v574, %v573
    %591 = vmatprep.subr.bf16.mxu0 0
    %592 = vmatpush1.bf16.msra.mxu0 %v575
    %593 = vmatprep.subr.bf16.mxu0 0
    %594 = vmatpush1.bf16.msra.mxu0 %v576
    %595 = vmatprep.subr.bf16.mxu0 0
    %596 = vmatpush1.bf16.msra.mxu0 %v577
    %597 = vmatprep.subr.bf16.mxu0 0
    %598 = vmatpush1.bf16.msra.mxu0 %v578
    %599 = vmatprep.subr.bf16.mxu0 0
    %600 = vmatpush1.bf16.msra.mxu0 %v579
    %601 = vmatprep.subr.bf16.mxu0 0
    %602 = vmatpush1.bf16.msra.mxu0 %v580
    %603 = vmatprep.subr.bf16.mxu0 0
    %604 = vmatpush1.bf16.msra.mxu0 %v581
    %605 = vmatprep.subr.bf16.mxu0 0
    %606 = vmatpush1.bf16.msra.mxu0 %v582
    %607 = vmatprep.subr.bf16.mxu0 0
    %608 = vmatpush1.bf16.msra.mxu0 0
    %609 = vmatprep.subr.bf16.mxu0 0
    %610 = vmatpush1.bf16.msra.mxu0 0
    %611 = vmatprep.subr.bf16.mxu0 0
    %612 = vmatpush1.bf16.msra.mxu0 0
    %613 = vmatprep.subr.bf16.mxu0 0
    %614 = vmatpush1.bf16.msra.mxu0 0
    %615 = vmatprep.subr.bf16.mxu0 0
    %616 = vmatpush1.bf16.msra.mxu0 0
    %617 = vmatprep.subr.bf16.mxu0 0
    %618 = vmatpush1.bf16.msra.mxu0 0
    %619 = vmatprep.subr.bf16.mxu0 0
    %620 = vmatpush1.bf16.msra.mxu0 0
    %621 = vmatprep.subr.bf16.mxu0 0
    %622 = vmatpush1.bf16.msra.mxu0 0
    %623 = vmatprep.mubr.bf16.mxu0 0
    %624 = vmatmul.mubr.bf16.gmra.mrb[0].mxu0 %v526
    %v625 = vpop.f32.mrb[0].mxu0
    %v626 = vadd.f32 0.0, %v625
    %v627 = vpop.f32.mrb[0].mxu0
    %v628 = vpop.f32.mrb[0].mxu0
    %v629 = vpop.f32.mrb[0].mxu0
    %630 = vdwg.mxu0
    %v631 = vadd.f32 %v512, %v626
    %v632 = vtanh.pop %v631
    %v633 = vsub.f32 %v632, %v96
    %v634 = vmul.f32 %v520, %v633
    %v635 = vadd.f32 %v96, %v634
    %636 = vst [vmem:[#allocation11] sm:$0xff] %v635
    %v637 = vpack.c.bf16 %v635, %v635
    %v638 = vld [vmem:[#allocation10] sm:$0xf]
    %v639 = vld [vmem:[#allocation10 + $0x4] sm:$0xf]
    %v640 = vld [vmem:[#allocation10 + $0x8] sm:$0xf]
    %v641 = vld [vmem:[#allocation10 + $0xc] sm:$0xf]
    %v642 = vld [vmem:[#allocation10 + $0x10] sm:$0xf]
    %v643 = vld [vmem:[#allocation10 + $0x14] sm:$0xf]
    %v644 = vld [vmem:[#allocation10 + $0x18] sm:$0xf]
    %v645 = vld [vmem:[#allocation10 + $0x1c] sm:$0xf]
    %v646 = vld [vmem:[#allocation10 + $0x20] sm:$0xf]
    %v647 = vld [vmem:[#allocation10 + $0x24] sm:$0xf]
    %v648 = vld [vmem:[#allocation10 + $0x28] sm:$0xf]
    %v649 = vld [vmem:[#allocation10 + $0x2c] sm:$0xf]
    %v650 = vld [vmem:[#allocation10 + $0x30] sm:$0xf]
    %v651 = vld [vmem:[#allocation10 + $0x34] sm:$0xf]
    %v652 = vld [vmem:[#allocation10 + $0x38] sm:$0xf]
    %v653 = vld [vmem:[#allocation10 + $0x3c] sm:$0xf]
    %v654 = vld [vmem:[%s6] sm:$0x1]
    %v656 = vlaneseq
    %v657 = vshrl.u32 %v656, 7
    %v658 = vsub.s32 0, %v657
    %v659 = vrot.slane %v654, %v658
    %v677 = vunpack.c.l.b16 %v638
    %v678 = vunpack.c.l.b16 %v639
    %v679 = vunpack.c.l.b16 %v640
    %v680 = vunpack.c.l.b16 %v641
    %v681 = vunpack.c.l.b16 %v642
    %v682 = vunpack.c.l.b16 %v643
    %v683 = vunpack.c.l.b16 %v644
    %v684 = vunpack.c.l.b16 %v645
    %v685 = vunpack.c.l.b16 %v646
    %v686 = vunpack.c.l.b16 %v647
    %v687 = vunpack.c.l.b16 %v648
    %v688 = vunpack.c.l.b16 %v649
    %v689 = vunpack.c.l.b16 %v650
    %v690 = vunpack.c.l.b16 %v651
    %v691 = vunpack.c.l.b16 %v652
    %v692 = vunpack.c.l.b16 %v653
    %v693 = vpack.c.b16 %v678, %v677
    %v694 = vpack.c.b16 %v680, %v679
    %v695 = vpack.c.b16 %v682, %v681
    %v696 = vpack.c.b16 %v684, %v683
    %v697 = vpack.c.b16 %v686, %v685
    %v698 = vpack.c.b16 %v688, %v687
    %v699 = vpack.c.b16 %v690, %v689
    %v700 = vpack.c.b16 %v692, %v691
    %709 = vmatprep.subr.bf16.mxu0 0
    %710 = vmatpush1.bf16.msra.mxu0 %v693
    %711 = vmatprep.subr.bf16.mxu0 0
    %712 = vmatpush1.bf16.msra.mxu0 %v694
    %713 = vmatprep.subr.bf16.mxu0 0
    %714 = vmatpush1.bf16.msra.mxu0 %v695
    %715 = vmatprep.subr.bf16.mxu0 0
    %716 = vmatpush1.bf16.msra.mxu0 %v696
    %717 = vmatprep.subr.bf16.mxu0 0
    %718 = vmatpush1.bf16.msra.mxu0 %v697
    %719 = vmatprep.subr.bf16.mxu0 0
    %720 = vmatpush1.bf16.msra.mxu0 %v698
    %721 = vmatprep.subr.bf16.mxu0 0
    %722 = vmatpush1.bf16.msra.mxu0 %v699
    %723 = vmatprep.subr.bf16.mxu0 0
    %724 = vmatpush1.bf16.msra.mxu0 %v700
    %725 = vmatprep.subr.bf16.mxu0 0
    %726 = vmatpush1.bf16.msra.mxu0 0
    %727 = vmatprep.subr.bf16.mxu0 0
    %728 = vmatpush1.bf16.msra.mxu0 0
    %729 = vmatprep.subr.bf16.mxu0 0
    %730 = vmatpush1.bf16.msra.mxu0 0
    %731 = vmatprep.subr.bf16.mxu0 0
    %732 = vmatpush1.bf16.msra.mxu0 0
    %733 = vmatprep.subr.bf16.mxu0 0
    %734 = vmatpush1.bf16.msra.mxu0 0
    %735 = vmatprep.subr.bf16.mxu0 0
    %736 = vmatpush1.bf16.msra.mxu0 0
    %737 = vmatprep.subr.bf16.mxu0 0
    %738 = vmatpush1.bf16.msra.mxu0 0
    %739 = vmatprep.subr.bf16.mxu0 0
    %740 = vmatpush1.bf16.msra.mxu0 0
    %741 = vmatprep.mubr.bf16.mxu0 0
    %742 = vmatmul.mubr.bf16.gmra.mrb[0].mxu0 %v637
    %v743 = vpop.f32.mrb[0].mxu0
    %v744 = vadd.f32 %v659, %v743
    %v745 = vpop.f32.mrb[0].mxu0
    %v746 = vpop.f32.mrb[0].mxu0
    %v747 = vpop.f32.mrb[0].mxu0
    %748 = vdwg.mxu0
    %749 = vst [vmem:[#allocation12] sm:$0xff] %v744
    // Predicated region
    $region50: #{tpu_custom_call.1} parent=1 // pred_check
      _
    $region51: #{tpu_custom_call.1} parent=1 // pred_check_branch
      %751 = sbr.rel (0) target = $region53
    $region52: #{tpu_custom_call.1} parent=1 // pred_region
      %s753 = ssub.s32 128, 128
      %754 = vsyncadd [#allocation4], %s753
      %s756 = sshll.u32 [#allocation11], 4
      %s757 = int_to_ptr.vmem [resolvable:$true] %s756
      %759 = dma.vmem_to_hbm [thread:$0]  %s757, 128, %s7, [#allocation4]
    $region53: #{tpu_custom_call.1} parent=1 // pred_fallthru
      _
    // Predicated region
    $region54: #{tpu_custom_call.1} parent=1 // pred_check
      _
    $region55: #{tpu_custom_call.1} parent=1 // pred_check_branch
      %761 = sbr.rel (0) target = $region57
    $region56: #{tpu_custom_call.1} parent=1 // pred_region
      %s763 = ssub.s32 128, 128
      %764 = vsyncadd [#allocation13], %s763
      %s766 = sshll.u32 [#allocation12], 4
      %s767 = int_to_ptr.vmem [resolvable:$true] %s766
      %769 = dma.vmem_to_hbm [thread:$0]  %s767, 128, %s8, [#allocation13]
    $region57: #{tpu_custom_call.1} parent=1 // pred_fallthru
      _
    // Predicated region
    $region58: #{tpu_custom_call.1} parent=1 // pred_check
      _
    $region59: #{tpu_custom_call.1} parent=1 // pred_check_branch
      %771 = sbr.rel (0) target = $region61
    $region60: #{tpu_custom_call.1} parent=1 // pred_region
      %772 = dma.done [#allocation4], 128
    $region61: #{tpu_custom_call.1} parent=1 // pred_fallthru
      _
    // Predicated region
    $region62: #{tpu_custom_call.1} parent=1 // pred_check
      _
    $region63: #{tpu_custom_call.1} parent=1 // pred_check_branch
      %774 = sbr.rel (0) target = $region65
    $region64: #{tpu_custom_call.1} parent=1 // pred_region
      %775 = dma.done [#allocation13], 128
    $region65: #{tpu_custom_call.1} parent=1 // pred_fallthru
      _
    %776 = vsyncpa [#allocation3], 1
    %777 = vsyncpa [#allocation6], 1
    %778 = vsyncpa [#allocation9], 1
    %779 = vsyncpa [#allocation4], 1
    %780 = vsyncpa [#allocation13], 1

</llo_original>
